<compile_context>
chip_gen: v7x
topology: tpu7x:2x2x1
jax: 0.10.0
libtpu: 0.0.40
codegen_flags: <defaults>
</compile_context>

<pallas_src>
import functools

import jax
import jax.numpy as jnp
from jax.experimental import pallas as pl
from jax.experimental.pallas import tpu as pltpu


def _dice_partial_kernel(pred_ref, target_ref, inter_ref, psum_ref, tsum_ref,
                         *, r_total, r_block, need_row_mask):
    """Accumulate per-sample (8,128) partial sums over the feature-row grid axis."""
    j = pl.program_id(1)

    @pl.when(j == 0)
    def _init():
        inter_ref[...] = jnp.zeros_like(inter_ref)
        psum_ref[...] = jnp.zeros_like(psum_ref)
        tsum_ref[...] = jnp.zeros_like(tsum_ref)

    p = pred_ref[...].astype(jnp.float32)     # (r_block, 128)
    t = target_ref[...].astype(jnp.float32)   # (r_block, 128)

    if need_row_mask:
        # The last feature block of a sample may run past the real row extent;
        # zero out-of-bounds rows (they can contain stale VMEM data).
        rows = jax.lax.broadcasted_iota(jnp.int32, (r_block, 128), 0) + j * r_block
        valid = rows < r_total
        p = jnp.where(valid, p, 0.0)
        t = jnp.where(valid, t, 0.0)

    # Fold the block down to (8, 128) partials with pure VPU adds.
    k = r_block // 8
    p3 = p.reshape(k, 8, 128)
    t3 = t.reshape(k, 8, 128)
    inter_ref[...] += jnp.sum(p3 * t3, axis=0)
    psum_ref[...] += jnp.sum(p3, axis=0)
    tsum_ref[...] += jnp.sum(t3, axis=0)


def dice_loss(pred, target):
    """Pallas equivalent of DiceLoss().forward(pred, target)."""
    assert pred.shape == target.shape
    n = pred.shape[0]
    f = 1
    for d in pred.shape[1:]:
        f *= d

    pred_flat = pred.reshape(n, f)
    target_flat = target.reshape(n, f)

    # Lane/sublane-dense layout: (n, rows, 128) with rows a multiple of 8.
    # Common segmentation shapes (C*H*W multiple of 1024) take the zero-copy
    # path; otherwise pad once with zeros (neutral for every sum involved).
    f_pad = ((f + 1023) // 1024) * 1024
    if f_pad != f:
        pad = ((0, 0), (0, f_pad - f))
        pred_flat = jnp.pad(pred_flat, pad)
        target_flat = jnp.pad(target_flat, pad)
    r_total = f_pad // 128            # multiple of 8
    pred3 = pred_flat.reshape(n, r_total, 128)
    target3 = target_flat.reshape(n, r_total, 128)

    # Row-block sizing: ~1 MiB per input block, rows a multiple of 8.
    itemsize = jnp.dtype(pred.dtype).itemsize
    r_block = max(8, ((1 << 20) // (128 * itemsize)) // 8 * 8)
    r_block = min(r_block, r_total)
    num_row_blocks = -(-r_total // r_block)
    need_row_mask = (r_total % r_block) != 0

    # Explicit VMEM budget: 2 inputs x 2 pipeline buffers x block + elementwise
    # temporaries + tiny outputs; safe on every generation's scoped limit.
    block_bytes = r_block * 128 * itemsize
    vmem_limit = int(min(6 * block_bytes + (4 << 20), 32 << 20))

    kernel = functools.partial(
        _dice_partial_kernel,
        r_total=r_total, r_block=r_block, need_row_mask=need_row_mask)

    part_shape = jax.ShapeDtypeStruct((n, 8, 128), jnp.float32)
    inter_p, psum_p, tsum_p = pl.pallas_call(
        kernel,
        out_shape=(part_shape, part_shape, part_shape),
        grid_spec=pltpu.PrefetchScalarGridSpec(
            num_scalar_prefetch=0,
            grid=(n, num_row_blocks),
            in_specs=[
                pl.BlockSpec((None, r_block, 128), lambda i, j: (i, j, 0)),
                pl.BlockSpec((None, r_block, 128), lambda i, j: (i, j, 0)),
            ],
            out_specs=[
                pl.BlockSpec((None, 8, 128), lambda i, j: (i, 0, 0)),
                pl.BlockSpec((None, 8, 128), lambda i, j: (i, 0, 0)),
                pl.BlockSpec((None, 8, 128), lambda i, j: (i, 0, 0)),
            ],
        ),
        compiler_params=pltpu.CompilerParams(
            dimension_semantics=("parallel", "arbitrary"),
            vmem_limit_bytes=vmem_limit),
    )(pred3, target3)

    # Final dice / mean in the wrapper (per-sample reductions are tiny and this
    # avoids any cross-core scalar write race when the batch axis is parallel).
    smooth = jnp.float32(1.0)
    inter = inter_p.sum(axis=(1, 2))      # (n,)
    psum = psum_p.sum(axis=(1, 2))
    tsum = tsum_p.sum(axis=(1, 2))
    dice_score = (2.0 * inter + smooth) / (psum + tsum + smooth)
    return 1.0 - jnp.sum(dice_score) / jnp.float32(n)


def dice_loss_ref(pred, target):
    """Pure-JAX reference matching the PyTorch forward exactly."""
    smooth = 1.0
    n = pred.shape[0]
    p = pred.reshape(n, -1)
    t = target.reshape(n, -1)
    intersection = p * t
    dice_score = (2.0 * intersection.sum(1) + smooth) / (p.sum(1) + t.sum(1) + smooth)
    return 1.0 - dice_score.sum() / n


if __name__ == "__main__":
    key = jax.random.PRNGKey(0)
    k1, k2 = jax.random.split(key)

    # NCHW, small shapes: batch=2, channels=4, spatial=16x16.
    pred = jax.nn.sigmoid(jax.random.normal(k1, (2, 4, 16, 16), dtype=jnp.float32))
    target = (jax.random.uniform(k2, (2, 4, 16, 16)) > 0.5).astype(jnp.float32)

    loss = jax.block_until_ready(dice_loss(pred, target))
    ref = jax.block_until_ready(dice_loss_ref(pred, target))

    assert jnp.allclose(loss, ref, atol=1e-5, rtol=1e-5), (loss, ref)
    print("KERNEL_OK")
</pallas_src>

<mosaic_0001>
module attributes {stable_mosaic.version = 11 : i64} {
  func.func @_dice_partial_kernel(%arg0: i32, %arg1: i32, %arg2: memref<1x8x128xf32, #tpu.memory_space<vmem>>, %arg3: memref<1x8x128xf32, #tpu.memory_space<vmem>>, %arg4: memref<1x8x128xf32, #tpu.memory_space<vmem>>, %arg5: memref<1x8x128xf32, #tpu.memory_space<vmem>>, %arg6: memref<1x8x128xf32, #tpu.memory_space<vmem>>) attributes {dimension_semantics = [#tpu.dimension_semantics<parallel>, #tpu.dimension_semantics<arbitrary>], iteration_bounds = array<i64: 2, 1>, scalar_prefetch = 0 : i64, scratch_operands = 0 : i64, tpu.core_type = #tpu.core_type<tc>, window_params = [{transform_indices = @transform_0, window_bounds = array<i64: 1, 8, 128>}, {transform_indices = @transform_1, window_bounds = array<i64: 1, 8, 128>}, {transform_indices = @transform_2, window_bounds = array<i64: 1, 8, 128>}, {transform_indices = @transform_3, window_bounds = array<i64: 1, 8, 128>}, {transform_indices = @transform_4, window_bounds = array<i64: 1, 8, 128>}]} {
    %c0_i32 = arith.constant 0 : i32
    %0 = arith.cmpi eq, %arg1, %c0_i32 : i32
    %1 = arith.extui %0 : i1 to i32
    %c0_i32_0 = arith.constant 0 : i32
    %2 = arith.cmpi ne, %1, %c0_i32_0 : i32
    scf.if %2 {
      %cst_26 = arith.constant 0.000000e+00 : f32
      %31 = vector.broadcast %cst_26 : f32 to vector<8x128xf32>
      %c0_27 = arith.constant 0 : index
      %c0_28 = arith.constant 0 : index
      %c0_29 = arith.constant 0 : index
      %32 = vector.load %arg4[%c0_27, %c0_28, %c0_29] : memref<1x8x128xf32, #tpu.memory_space<vmem>>, vector<1x8x128xf32>
      %33 = vector.shape_cast %32 : vector<1x8x128xf32> to vector<8x128xf32>
      %34 = vector.shape_cast %31 : vector<8x128xf32> to vector<1x8x128xf32>
      tpu.vector_store %arg4[%c0_27, %c0_28, %c0_29], %34 {strides = array<i32>} : memref<1x8x128xf32, #tpu.memory_space<vmem>>, vector<1x8x128xf32>,
      %cst_30 = arith.constant 0.000000e+00 : f32
      %35 = vector.broadcast %cst_30 : f32 to vector<8x128xf32>
      %c0_31 = arith.constant 0 : index
      %c0_32 = arith.constant 0 : index
      %c0_33 = arith.constant 0 : index
      %36 = vector.load %arg5[%c0_31, %c0_32, %c0_33] : memref<1x8x128xf32, #tpu.memory_space<vmem>>, vector<1x8x128xf32>
      %37 = vector.shape_cast %36 : vector<1x8x128xf32> to vector<8x128xf32>
      %38 = vector.shape_cast %35 : vector<8x128xf32> to vector<1x8x128xf32>
      tpu.vector_store %arg5[%c0_31, %c0_32, %c0_33], %38 {strides = array<i32>} : memref<1x8x128xf32, #tpu.memory_space<vmem>>, vector<1x8x128xf32>,
      %cst_34 = arith.constant 0.000000e+00 : f32
      %39 = vector.broadcast %cst_34 : f32 to vector<8x128xf32>
      %c0_35 = arith.constant 0 : index
      %c0_36 = arith.constant 0 : index
      %c0_37 = arith.constant 0 : index
      %40 = vector.load %arg6[%c0_35, %c0_36, %c0_37] : memref<1x8x128xf32, #tpu.memory_space<vmem>>, vector<1x8x128xf32>
      %41 = vector.shape_cast %40 : vector<1x8x128xf32> to vector<8x128xf32>
      %42 = vector.shape_cast %39 : vector<8x128xf32> to vector<1x8x128xf32>
      tpu.vector_store %arg6[%c0_35, %c0_36, %c0_37], %42 {strides = array<i32>} : memref<1x8x128xf32, #tpu.memory_space<vmem>>, vector<1x8x128xf32>,
    } else {
    }
    %c0 = arith.constant 0 : index
    %c0_1 = arith.constant 0 : index
    %c0_2 = arith.constant 0 : index
    %3 = vector.load %arg2[%c0, %c0_1, %c0_2] : memref<1x8x128xf32, #tpu.memory_space<vmem>>, vector<1x8x128xf32>
    %4 = vector.shape_cast %3 : vector<1x8x128xf32> to vector<8x128xf32>
    %c0_3 = arith.constant 0 : index
    %c0_4 = arith.constant 0 : index
    %c0_5 = arith.constant 0 : index
    %5 = vector.load %arg3[%c0_3, %c0_4, %c0_5] : memref<1x8x128xf32, #tpu.memory_space<vmem>>, vector<1x8x128xf32>
    %6 = vector.shape_cast %5 : vector<1x8x128xf32> to vector<8x128xf32>
    %7 = vector.shape_cast %4 : vector<8x128xf32> to vector<1x8x128xf32>
    %8 = vector.shape_cast %6 : vector<8x128xf32> to vector<1x8x128xf32>
    %c0_6 = arith.constant 0 : index
    %c0_7 = arith.constant 0 : index
    %c0_8 = arith.constant 0 : index
    %9 = vector.load %arg4[%c0_6, %c0_7, %c0_8] : memref<1x8x128xf32, #tpu.memory_space<vmem>>, vector<1x8x128xf32>
    %10 = vector.shape_cast %9 : vector<1x8x128xf32> to vector<8x128xf32>
    %11 = arith.mulf %7, %8 : vector<1x8x128xf32>
    %cst = arith.constant dense<0.000000e+00> : vector<8x128xf32>
    %12 = vector.multi_reduction <add>, %11, %cst [0] : vector<1x8x128xf32> to vector<8x128xf32>
    %13 = arith.addf %10, %12 : vector<8x128xf32>
    %c0_9 = arith.constant 0 : index
    %c0_10 = arith.constant 0 : index
    %c0_11 = arith.constant 0 : index
    %14 = vector.load %arg4[%c0_9, %c0_10, %c0_11] : memref<1x8x128xf32, #tpu.memory_space<vmem>>, vector<1x8x128xf32>
    %15 = vector.shape_cast %14 : vector<1x8x128xf32> to vector<8x128xf32>
    %16 = vector.shape_cast %13 : vector<8x128xf32> to vector<1x8x128xf32>
    tpu.vector_store %arg4[%c0_9, %c0_10, %c0_11], %16 {strides = array<i32>} : memref<1x8x128xf32, #tpu.memory_space<vmem>>, vector<1x8x128xf32>,
    %c0_12 = arith.constant 0 : index
    %c0_13 = arith.constant 0 : index
    %c0_14 = arith.constant 0 : index
    %17 = vector.load %arg5[%c0_12, %c0_13, %c0_14] : memref<1x8x128xf32, #tpu.memory_space<vmem>>, vector<1x8x128xf32>
    %18 = vector.shape_cast %17 : vector<1x8x128xf32> to vector<8x128xf32>
    %cst_15 = arith.constant dense<0.000000e+00> : vector<8x128xf32>
    %19 = vector.multi_reduction <add>, %7, %cst_15 [0] : vector<1x8x128xf32> to vector<8x128xf32>
    %20 = arith.addf %18, %19 : vector<8x128xf32>
    %c0_16 = arith.constant 0 : index
    %c0_17 = arith.constant 0 : index
    %c0_18 = arith.constant 0 : index
    %21 = vector.load %arg5[%c0_16, %c0_17, %c0_18] : memref<1x8x128xf32, #tpu.memory_space<vmem>>, vector<1x8x128xf32>
    %22 = vector.shape_cast %21 : vector<1x8x128xf32> to vector<8x128xf32>
    %23 = vector.shape_cast %20 : vector<8x128xf32> to vector<1x8x128xf32>
    tpu.vector_store %arg5[%c0_16, %c0_17, %c0_18], %23 {strides = array<i32>} : memref<1x8x128xf32, #tpu.memory_space<vmem>>, vector<1x8x128xf32>,
    %c0_19 = arith.constant 0 : index
    %c0_20 = arith.constant 0 : index
    %c0_21 = arith.constant 0 : index
    %24 = vector.load %arg6[%c0_19, %c0_20, %c0_21] : memref<1x8x128xf32, #tpu.memory_space<vmem>>, vector<1x8x128xf32>
    %25 = vector.shape_cast %24 : vector<1x8x128xf32> to vector<8x128xf32>
    %cst_22 = arith.constant dense<0.000000e+00> : vector<8x128xf32>
    %26 = vector.multi_reduction <add>, %8, %cst_22 [0] : vector<1x8x128xf32> to vector<8x128xf32>
    %27 = arith.addf %25, %26 : vector<8x128xf32>
    %c0_23 = arith.constant 0 : index
    %c0_24 = arith.constant 0 : index
    %c0_25 = arith.constant 0 : index
    %28 = vector.load %arg6[%c0_23, %c0_24, %c0_25] : memref<1x8x128xf32, #tpu.memory_space<vmem>>, vector<1x8x128xf32>
    %29 = vector.shape_cast %28 : vector<1x8x128xf32> to vector<8x128xf32>
    %30 = vector.shape_cast %27 : vector<8x128xf32> to vector<1x8x128xf32>
    tpu.vector_store %arg6[%c0_23, %c0_24, %c0_25], %30 {strides = array<i32>} : memref<1x8x128xf32, #tpu.memory_space<vmem>>, vector<1x8x128xf32>,
    return
  }
  func.func @transform_0(%arg0: i32, %arg1: i32) -> (i32, i32, i32) {
    %c0_i32 = arith.constant 0 : i32
    %c0_i32_0 = arith.constant 0 : i32
    return %arg0, %arg1, %c0_i32 : i32, i32, i32
  }
  func.func @transform_1(%arg0: i32, %arg1: i32) -> (i32, i32, i32) {
    %c0_i32 = arith.constant 0 : i32
    %c0_i32_0 = arith.constant 0 : i32
    return %arg0, %arg1, %c0_i32 : i32, i32, i32
  }
  func.func @transform_2(%arg0: i32, %arg1: i32) -> (i32, i32, i32) {
    %c0_i32 = arith.constant 0 : i32
    %c0_i32_0 = arith.constant 0 : i32
    %c0_i32_1 = arith.constant 0 : i32
    return %arg0, %c0_i32, %c0_i32_0 : i32, i32, i32
  }
  func.func @transform_3(%arg0: i32, %arg1: i32) -> (i32, i32, i32) {
    %c0_i32 = arith.constant 0 : i32
    %c0_i32_0 = arith.constant 0 : i32
    %c0_i32_1 = arith.constant 0 : i32
    return %arg0, %c0_i32, %c0_i32_0 : i32, i32, i32
  }
  func.func @transform_4(%arg0: i32, %arg1: i32) -> (i32, i32, i32) {
    %c0_i32 = arith.constant 0 : i32
    %c0_i32_0 = arith.constant 0 : i32
    %c0_i32_1 = arith.constant 0 : i32
    return %arg0, %c0_i32, %c0_i32_0 : i32, i32, i32
  }
}

</mosaic_0001>

<llo_original>
// kernel: tpu_custom_call.1
$region0: #{tpu_custom_call.1}
  #allocation0 [shape = 'u32[]', space=smem, size = 0x4, offset = 0x4, fixed_abs, tag = 'smem constant byte address 0x4 - core index']
  #allocation1 [shape = 'u32[144,128]{1,0:T(1,128)}', space=vmem, size = 0x12000, scoped, tag = 'internal scratch']
  %s0 = inlined_call_operand.hbm [shape: f32[2,8,128], index: 0, kind: input, shape index: {}]
  %s1 = inlined_call_operand.hbm [shape: f32[2,8,128], index: 1, kind: input, shape index: {}]
  %s2 = inlined_call_operand.hbm [shape: f32[2,8,128], index: 2, kind: output, shape index: {0}]
  %s3 = inlined_call_operand.hbm [shape: f32[2,8,128], index: 3, kind: output, shape index: {1}]
  %s4 = inlined_call_operand.hbm [shape: f32[2,8,128], index: 4, kind: output, shape index: {2}]
  %5 = xla_tuple %s2, %s3, %s4
  %s6 = sld [smem:[#allocation0]]
  $region69: #{tpu_custom_call.1} parent=0
    _
  %s8 = ssub.s32 1, %s6
  %s9 = scalar_select 0, %s8, %s6
  $region1: #{tpu_custom_call.1} parent=0
    #allocation2 [shape = 'u8[8192]{0}', space=vmem, size = 0x2000, scoped, tag = 'input window, operand 0']
    #allocation3 [shape = 's32[2]{0}', space=sflag, size = 0x8, scoped, tag = 'scoped memory for tpu_custom_call.1']
    #allocation4 [shape = 's32[2]{0}', space=sflag, size = 0x8, scoped, tag = 'scoped memory for tpu_custom_call.1']
    #allocation5 [shape = 'u8[8192]{0}', space=vmem, size = 0x2000, scoped, tag = 'input window, operand 1']
    #allocation6 [shape = 's32[2]{0}', space=sflag, size = 0x8, scoped, tag = 'scoped memory for tpu_custom_call.1']
    #allocation7 [shape = 'u8[8192]{0}', space=vmem, size = 0x2000, scoped, tag = 'output window, operand 0']
    #allocation8 [shape = 'u8[8192]{0}', space=vmem, size = 0x2000, scoped, tag = 'output window, operand 1']
    #allocation9 [shape = 's32[2]{0}', space=sflag, size = 0x8, scoped, tag = 'scoped memory for tpu_custom_call.1']
    #allocation10 [shape = 'u8[8192]{0}', space=vmem, size = 0x2000, scoped, tag = 'output window, operand 2']
    %10 = vsyncpa [#allocation3], 0
    %s11 = scalar_lea.sflag [#allocation3], 1
    %12 = vsyncpa %s11, 0
    %13 = vsyncpa [#allocation6], 0
    %s14 = scalar_lea.sflag [#allocation6], 1
    %15 = vsyncpa %s14, 0
    %16 = vsyncpa [#allocation4], 0
    %s17 = scalar_lea.sflag [#allocation4], 1
    %18 = vsyncpa %s17, 0
    %19 = vsyncpa [#allocation9], 0
    %s20 = scalar_lea.sflag [#allocation9], 1
    %21 = vsyncpa %s20, 0
    loop: start=0, step=1, limit=4
    $region2: #{tpu_custom_call.1} parent=1 // loop_pre_header
      _
    $region3: #{tpu_custom_call.1} parent=1 // loop_header
      %s23 = sphi 0, %s27
      %p24 = scmp.ge.s32.totalorder %s23, 4
      %s30 = sphi 0, %s42
      %s31 = sphi 0, %s38
      %s32 = sphi 0, %s30
      %s33 = sphi 0, %s31
      %s34 = sphi 0, %s32
      %s35 = sphi 0, %s33
      %s47 = sphi 0, %s49
      %s50 = sphi 0, %s47
      %s51 = sphi 0, %s50
      %s67 = sphi 0, %s51
      %s75 = sphi 0, %s77
      %s78 = sphi 0, %s75
      %s79 = sphi 0, %s78
      %s95 = sphi 0, %s79
      %s101 = sphi 0, %s103
      %s104 = sphi 0, %s101
      %s105 = sphi 0, %s104
      %s121 = sphi 0, %s105
      %s127 = sphi 0, %s129
      %s130 = sphi 0, %s127
      %s131 = sphi 0, %s130
      %s147 = sphi 0, %s131
      %s153 = sphi 0, %s155
      %s156 = sphi 0, %s153
      %s157 = sphi 0, %s156
      %s173 = sphi 0, %s157
    $region4: #{tpu_custom_call.1} parent=1 // loop_header_branch
      %26 = sbr.rel (%p24) target = $region8
    $region5: #{tpu_custom_call.1} parent=1 // loop_body
      %s28 = ssub.s32 %s23, 1
      %s29 = ssub.s32 %s23, 2
      %s36 = sadd.s32 1, %s31
      %p37 = scmp.ge.s32.totalorder %s36, 1
      %s38 = scalar_select %p37, 0, %s36
      %s39 = sadd.s32 1, %s30
      %s40 = scalar_select %p37, %s39, %s30
      %p41 = scmp.ge.s32.totalorder %s40, 2
      %s42 = scalar_select %p41, 0, %s40
      %s43 = ssub.s32 %s30, %s42
      %s44 = ssub.s32 %s31, %s38
      %s45 = sor.u32 %s43, %s44
      %p46 = scmp.eq.s32.totalorder %s45, 0
      %s48 = sadd.s32 %s47, 1
      %s49 = scalar_select %p46, %s47, %s48
      %p52 = pneg %p46
      %p53 = scmp.eq.s32.totalorder %s23, 1
      %p54 = por %p52, %p53
      %p55 = scmp.ne.s32.totalorder %s47, %s50
      %p56 = scmp.eq.s32.totalorder %s23, 0
      %p57 = por %p55, %p56
      %p58 = scmp.ne.s32.totalorder %s47, %s50
      %p59 = scmp.eq.s32.totalorder %s28, 1
      %p60 = por %p58, %p59
      %p61 = scmp.ne.s32.totalorder %s50, %s51
      %p62 = scmp.eq.s32.totalorder %s28, 0
      %p63 = por %p61, %p62
      %p64 = scmp.ne.s32.totalorder %s50, %s51
      %p65 = scmp.eq.s32.totalorder %s29, 1
      %p66 = por %p64, %p65
      %p68 = scmp.ne.s32.totalorder %s51, %s67
      %p69 = scmp.eq.s32.totalorder %s29, 0
      %p70 = por %p68, %p69
      %s71 = ssub.s32 %s30, %s42
      %s72 = ssub.s32 %s31, %s38
      %s73 = sor.u32 %s71, %s72
      %p74 = scmp.eq.s32.totalorder %s73, 0
      %s76 = sadd.s32 %s75, 1
      %s77 = scalar_select %p74, %s75, %s76
      %p80 = pneg %p74
      %p81 = scmp.eq.s32.totalorder %s23, 1
      %p82 = por %p80, %p81
      %p83 = scmp.ne.s32.totalorder %s75, %s78
      %p84 = scmp.eq.s32.totalorder %s23, 0
      %p85 = por %p83, %p84
      %p86 = scmp.ne.s32.totalorder %s75, %s78
      %p87 = scmp.eq.s32.totalorder %s28, 1
      %p88 = por %p86, %p87
      %p89 = scmp.ne.s32.totalorder %s78, %s79
      %p90 = scmp.eq.s32.totalorder %s28, 0
      %p91 = por %p89, %p90
      %p92 = scmp.ne.s32.totalorder %s78, %s79
      %p93 = scmp.eq.s32.totalorder %s29, 1
      %p94 = por %p92, %p93
      %p96 = scmp.ne.s32.totalorder %s79, %s95
      %p97 = scmp.eq.s32.totalorder %s29, 0
      %p98 = por %p96, %p97
      %s99 = ssub.s32 %s30, %s42
      %p100 = scmp.eq.s32.totalorder %s99, 0
      %s102 = sadd.s32 %s101, 1
      %s103 = scalar_select %p100, %s101, %s102
      %p106 = pneg %p100
      %p107 = scmp.eq.s32.totalorder %s23, 1
      %p108 = por %p106, %p107
      %p109 = scmp.ne.s32.totalorder %s101, %s104
      %p110 = scmp.eq.s32.totalorder %s23, 0
      %p111 = por %p109, %p110
      %p112 = scmp.ne.s32.totalorder %s101, %s104
      %p113 = scmp.eq.s32.totalorder %s28, 1
      %p114 = por %p112, %p113
      %p115 = scmp.ne.s32.totalorder %s104, %s105
      %p116 = scmp.eq.s32.totalorder %s28, 0
      %p117 = por %p115, %p116
      %p118 = scmp.ne.s32.totalorder %s104, %s105
      %p119 = scmp.eq.s32.totalorder %s29, 1
      %p120 = por %p118, %p119
      %p122 = scmp.ne.s32.totalorder %s105, %s121
      %p123 = scmp.eq.s32.totalorder %s29, 0
      %p124 = por %p122, %p123
      %s125 = ssub.s32 %s30, %s42
      %p126 = scmp.eq.s32.totalorder %s125, 0
      %s128 = sadd.s32 %s127, 1
      %s129 = scalar_select %p126, %s127, %s128
      %p132 = pneg %p126
      %p133 = scmp.eq.s32.totalorder %s23, 1
      %p134 = por %p132, %p133
      %p135 = scmp.ne.s32.totalorder %s127, %s130
      %p136 = scmp.eq.s32.totalorder %s23, 0
      %p137 = por %p135, %p136
      %p138 = scmp.ne.s32.totalorder %s127, %s130
      %p139 = scmp.eq.s32.totalorder %s28, 1
      %p140 = por %p138, %p139
      %p141 = scmp.ne.s32.totalorder %s130, %s131
      %p142 = scmp.eq.s32.totalorder %s28, 0
      %p143 = por %p141, %p142
      %p144 = scmp.ne.s32.totalorder %s130, %s131
      %p145 = scmp.eq.s32.totalorder %s29, 1
      %p146 = por %p144, %p145
      %p148 = scmp.ne.s32.totalorder %s131, %s147
      %p149 = scmp.eq.s32.totalorder %s29, 0
      %p150 = por %p148, %p149
      %s151 = ssub.s32 %s30, %s42
      %p152 = scmp.eq.s32.totalorder %s151, 0
      %s154 = sadd.s32 %s153, 1
      %s155 = scalar_select %p152, %s153, %s154
      %p158 = pneg %p152
      %p159 = scmp.eq.s32.totalorder %s23, 1
      %p160 = por %p158, %p159
      %p161 = scmp.ne.s32.totalorder %s153, %s156
      %p162 = scmp.eq.s32.totalorder %s23, 0
      %p163 = por %p161, %p162
      %p164 = scmp.ne.s32.totalorder %s153, %s156
      %p165 = scmp.eq.s32.totalorder %s28, 1
      %p166 = por %p164, %p165
      %p167 = scmp.ne.s32.totalorder %s156, %s157
      %p168 = scmp.eq.s32.totalorder %s28, 0
      %p169 = por %p167, %p168
      %p170 = scmp.ne.s32.totalorder %s156, %s157
      %p171 = scmp.eq.s32.totalorder %s29, 1
      %p172 = por %p170, %p171
      %p174 = scmp.ne.s32.totalorder %s157, %s173
      %p175 = scmp.eq.s32.totalorder %s29, 0
      %p176 = por %p174, %p175
      %p177 = scmp.le.s32.totalorder 1, %s23
      %p178 = scmp.lt.s32.totalorder %s23, 3
      %p179 = pnand %p177, %p178
      %p180 = pneg %p179
      // Predicated region
      $region9: #{tpu_custom_call.1} parent=5 // pred_check
        _
      $region10: #{tpu_custom_call.1} parent=5 // pred_check_branch
        %182 = sbr.rel (%p179) target = $region12
      $region11: #{tpu_custom_call.1} parent=5 // pred_region
        %s183 = ssub.s32 %s23, 1
      $region12: #{tpu_custom_call.1} parent=5 // pred_fallthru
        _
      %p184 = scmp.lt.s32.totalorder %s23, 2
      // Predicated region
      $region13: #{tpu_custom_call.1} parent=5 // pred_check
        %p185 = pneg %p184
      $region14: #{tpu_custom_call.1} parent=5 // pred_check_branch
        %187 = sbr.rel (%p185) target = $region16
      $region15: #{tpu_custom_call.1} parent=5 // pred_region
        // Predicated region
        $region17: #{tpu_custom_call.1} parent=15 // pred_check
          %p188 = pneg %p57
        $region18: #{tpu_custom_call.1} parent=15 // pred_check_branch
          %190 = sbr.rel (%p188) target = $region20
        $region19: #{tpu_custom_call.1} parent=15 // pred_region
          %s191 = sand.u32 %s47, 1
          %s192 = scalar_lea.sflag [#allocation3], %s191
          %s193 = sand.u32 %s47, 1
          %s194 = smul.addr %s193, 8
          %s195 = scalar_lea.vmem [#allocation2], %s194
          %s197 = ssub.s32 128, 128
          %198 = vsyncadd %s192, %s197
          %s199 = sadd.s32 %s31, %s30
          %s200 = smul.addr %s199, 128
          %s201 = scalar_lea.hbm %s0, %s200
          %s203 = sshll.u32 %s195, 4
          %s204 = int_to_ptr.vmem [resolvable:$true] %s203
          %206 = dma.hbm_to_vmem [thread:$0]  %s201, 128, %s204, %s192
        $region20: #{tpu_custom_call.1} parent=15 // pred_fallthru
          _
        // Predicated region
        $region21: #{tpu_custom_call.1} parent=15 // pred_check
          %p207 = pneg %p85
        $region22: #{tpu_custom_call.1} parent=15 // pred_check_branch
          %209 = sbr.rel (%p207) target = $region24
        $region23: #{tpu_custom_call.1} parent=15 // pred_region
          %s210 = sand.u32 %s75, 1
          %s211 = scalar_lea.sflag [#allocation6], %s210
          %s212 = sand.u32 %s75, 1
          %s213 = smul.addr %s212, 8
          %s214 = scalar_lea.vmem [#allocation5], %s213
          %s216 = ssub.s32 128, 128
          %217 = vsyncadd %s211, %s216
          %s218 = sadd.s32 %s31, %s30
          %s219 = smul.addr %s218, 128
          %s220 = scalar_lea.hbm %s1, %s219
          %s222 = sshll.u32 %s214, 4
          %s223 = int_to_ptr.vmem [resolvable:$true] %s222
          %225 = dma.hbm_to_vmem [thread:$0]  %s220, 128, %s223, %s211
        $region24: #{tpu_custom_call.1} parent=15 // pred_fallthru
          _
      $region16: #{tpu_custom_call.1} parent=5 // pred_fallthru
        _
      %p226 = scmp.le.s32.totalorder 1, %s23
      %p227 = scmp.lt.s32.totalorder %s23, 3
      %p228 = pnand %p226, %p227
      %p229 = pneg %p228
      // Predicated region
      $region25: #{tpu_custom_call.1} parent=5 // pred_check
        _
      $region26: #{tpu_custom_call.1} parent=5 // pred_check_branch
        %231 = sbr.rel (%p228) target = $region28
      $region27: #{tpu_custom_call.1} parent=5 // pred_region
        %s232 = ssub.s32 %s23, 1
        %s233 = sand.u32 %s50, 1
        %s234 = scalar_lea.sflag [#allocation3], %s233
        %s235 = sand.u32 %s50, 1
        %s236 = smul.addr %s235, 8
        %s237 = scalar_lea.vmem [#allocation2], %s236
        // Predicated region
        $region29: #{tpu_custom_call.1} parent=27 // pred_check
          %p238 = pneg %p63
        $region30: #{tpu_custom_call.1} parent=27 // pred_check_branch
          %240 = sbr.rel (%p238) target = $region32
        $region31: #{tpu_custom_call.1} parent=27 // pred_region
          %241 = dma.done %s234, 128
        $region32: #{tpu_custom_call.1} parent=27 // pred_fallthru
          _
        %s242 = sand.u32 %s78, 1
        %s243 = scalar_lea.sflag [#allocation6], %s242
        %s244 = sand.u32 %s78, 1
        %s245 = smul.addr %s244, 8
        %s246 = scalar_lea.vmem [#allocation5], %s245
        // Predicated region
        $region33: #{tpu_custom_call.1} parent=27 // pred_check
          %p247 = pneg %p91
        $region34: #{tpu_custom_call.1} parent=27 // pred_check_branch
          %249 = sbr.rel (%p247) target = $region36
        $region35: #{tpu_custom_call.1} parent=27 // pred_region
          %250 = dma.done %s243, 128
        $region36: #{tpu_custom_call.1} parent=27 // pred_fallthru
          _
        %s251 = sand.u32 %s50, 1
        %s252 = scalar_lea.sflag [#allocation3], %s251
        %s253 = sand.u32 %s50, 1
        %s254 = smul.addr %s253, 8
        %s255 = scalar_lea.vmem [#allocation2], %s254
        %p256 = pneg %p63
        %p257 = pneg %p60
        %s258 = sand.u32 %s78, 1
        %s259 = scalar_lea.sflag [#allocation6], %s258
        %s260 = sand.u32 %s78, 1
        %s261 = smul.addr %s260, 8
        %s262 = scalar_lea.vmem [#allocation5], %s261
        %p263 = pneg %p91
        %p264 = pneg %p88
        %p265 = pneg %p117
        %p266 = pneg %p114
        %s267 = sand.u32 %s104, 1
        %s268 = scalar_lea.sflag [#allocation4], %s267
        %s269 = sand.u32 %s104, 1
        %s270 = smul.addr %s269, 8
        %s271 = scalar_lea.vmem [#allocation7], %s270
        %p272 = pneg %p143
        %p273 = pneg %p140
        %s274 = sand.u32 %s28, 1
        %s275 = scalar_lea.sflag [#allocation9], %s274
        %s276 = sand.u32 %s130, 1
        %s277 = smul.addr %s276, 8
        %s278 = scalar_lea.vmem [#allocation8], %s277
        %p279 = pneg %p169
        %p280 = pneg %p166
        %s281 = sand.u32 %s28, 1
        %s282 = scalar_lea.sflag [#allocation9], %s281
        %s283 = sand.u32 %s156, 1
        %s284 = smul.addr %s283, 8
        %s285 = scalar_lea.vmem [#allocation10], %s284
        %p286 = scmp.eq.s32.totalorder %s33, 0
        // Predicated region
        $region37: #{tpu_custom_call.1} parent=27 // pred_check
          %p287 = pneg %p286
        $region38: #{tpu_custom_call.1} parent=27 // pred_check_branch
          %289 = sbr.rel (%p287) target = $region40
        $region39: #{tpu_custom_call.1} parent=27 // pred_region
          %290 = vst [vmem:[%s271] sm:$0xff] 0.0
          %291 = vst [vmem:[%s278] sm:$0xff] 0.0
          %292 = vst [vmem:[%s285] sm:$0xff] 0.0
        $region40: #{tpu_custom_call.1} parent=27 // pred_fallthru
          _
        %v293 = vld [vmem:[%s237] sm:$0xff]
        %v294 = vld [vmem:[%s246] sm:$0xff]
        %v295 = vld [vmem:[%s271] sm:$0xff]
        %v296 = vmul.f32 %v293, %v294
        %v297 = vadd.f32 %v296, 0.0
        %v298 = vadd.f32 %v295, %v297
        %299 = vst [vmem:[%s271] sm:$0xff] %v298
        %v300 = vld [vmem:[%s278] sm:$0xff]
        %v301 = vadd.f32 %v293, 0.0
        %v302 = vadd.f32 %v300, %v301
        %303 = vst [vmem:[%s278] sm:$0xff] %v302
        %v304 = vld [vmem:[%s285] sm:$0xff]
        %v305 = vadd.f32 %v294, 0.0
        %v306 = vadd.f32 %v304, %v305
        %307 = vst [vmem:[%s285] sm:$0xff] %v306
        %s308 = sand.u32 %s104, 1
        %s309 = scalar_lea.sflag [#allocation4], %s308
        %s310 = sand.u32 %s104, 1
        %s311 = smul.addr %s310, 8
        %s312 = scalar_lea.vmem [#allocation7], %s311
        %s313 = sand.u32 %s28, 1
        %s314 = scalar_lea.sflag [#allocation9], %s313
        %s315 = sand.u32 %s130, 1
        %s316 = smul.addr %s315, 8
        %s317 = scalar_lea.vmem [#allocation8], %s316
        %s318 = sand.u32 %s28, 1
        %s319 = scalar_lea.sflag [#allocation9], %s318
        %s320 = sand.u32 %s156, 1
        %s321 = smul.addr %s320, 8
        %s322 = scalar_lea.vmem [#allocation10], %s321
        // Predicated region
        $region41: #{tpu_custom_call.1} parent=27 // pred_check
          %p323 = pneg %p114
        $region42: #{tpu_custom_call.1} parent=27 // pred_check_branch
          %325 = sbr.rel (%p323) target = $region44
        $region43: #{tpu_custom_call.1} parent=27 // pred_region
          %s327 = ssub.s32 128, 128
          %328 = vsyncadd %s309, %s327
          %s329 = smul.addr %s32, 128
          %s330 = scalar_lea.hbm %s2, %s329
          %s332 = sshll.u32 %s312, 4
          %s333 = int_to_ptr.vmem [resolvable:$true] %s332
          %335 = dma.vmem_to_hbm [thread:$0]  %s333, 128, %s330, %s309
        $region44: #{tpu_custom_call.1} parent=27 // pred_fallthru
          _
        // Predicated region
        $region45: #{tpu_custom_call.1} parent=27 // pred_check
          %p336 = pneg %p140
        $region46: #{tpu_custom_call.1} parent=27 // pred_check_branch
          %338 = sbr.rel (%p336) target = $region48
        $region47: #{tpu_custom_call.1} parent=27 // pred_region
          %s340 = ssub.s32 128, 128
          %341 = vsyncadd %s314, %s340
          %s342 = smul.addr %s32, 128
          %s343 = scalar_lea.hbm %s3, %s342
          %s345 = sshll.u32 %s317, 4
          %s346 = int_to_ptr.vmem [resolvable:$true] %s345
          %348 = dma.vmem_to_hbm [thread:$0]  %s346, 128, %s343, %s314
        $region48: #{tpu_custom_call.1} parent=27 // pred_fallthru
          _
        // Predicated region
        $region49: #{tpu_custom_call.1} parent=27 // pred_check
          %p349 = pneg %p166
        $region50: #{tpu_custom_call.1} parent=27 // pred_check_branch
          %351 = sbr.rel (%p349) target = $region52
        $region51: #{tpu_custom_call.1} parent=27 // pred_region
          %s353 = ssub.s32 128, 128
          %354 = vsyncadd %s319, %s353
          %s355 = smul.addr %s32, 128
          %s356 = scalar_lea.hbm %s4, %s355
          %s358 = sshll.u32 %s322, 4
          %s359 = int_to_ptr.vmem [resolvable:$true] %s358
          %361 = dma.vmem_to_hbm [thread:$0]  %s359, 128, %s356, %s319
        $region52: #{tpu_custom_call.1} parent=27 // pred_fallthru
          _
      $region28: #{tpu_custom_call.1} parent=5 // pred_fallthru
        _
      %p362 = scmp.le.s32.totalorder 2, %s23
      // Predicated region
      $region53: #{tpu_custom_call.1} parent=5 // pred_check
        %p363 = pneg %p362
      $region54: #{tpu_custom_call.1} parent=5 // pred_check_branch
        %365 = sbr.rel (%p363) target = $region56
      $region55: #{tpu_custom_call.1} parent=5 // pred_region
        %s366 = ssub.s32 %s23, 2
        // Predicated region
        $region57: #{tpu_custom_call.1} parent=55 // pred_check
          %p367 = pneg %p120
        $region58: #{tpu_custom_call.1} parent=55 // pred_check_branch
          %369 = sbr.rel (%p367) target = $region60
        $region59: #{tpu_custom_call.1} parent=55 // pred_region
          %s370 = sand.u32 %s105, 1
          %s371 = scalar_lea.sflag [#allocation4], %s370
          %s372 = sand.u32 %s105, 1
          %s373 = smul.addr %s372, 8
          %s374 = scalar_lea.vmem [#allocation7], %s373
          %375 = dma.done %s371, 128
        $region60: #{tpu_custom_call.1} parent=55 // pred_fallthru
          _
        // Predicated region
        $region61: #{tpu_custom_call.1} parent=55 // pred_check
          %p376 = pneg %p146
        $region62: #{tpu_custom_call.1} parent=55 // pred_check_branch
          %378 = sbr.rel (%p376) target = $region64
        $region63: #{tpu_custom_call.1} parent=55 // pred_region
          %s379 = sand.u32 %s29, 1
          %s380 = scalar_lea.sflag [#allocation9], %s379
          %s381 = sand.u32 %s131, 1
          %s382 = smul.addr %s381, 8
          %s383 = scalar_lea.vmem [#allocation8], %s382
          %384 = dma.done %s380, 128
        $region64: #{tpu_custom_call.1} parent=55 // pred_fallthru
          _
        // Predicated region
        $region65: #{tpu_custom_call.1} parent=55 // pred_check
          %p385 = pneg %p172
        $region66: #{tpu_custom_call.1} parent=55 // pred_check_branch
          %387 = sbr.rel (%p385) target = $region68
        $region67: #{tpu_custom_call.1} parent=55 // pred_region
          %s388 = sand.u32 %s29, 1
          %s389 = scalar_lea.sflag [#allocation9], %s388
          %s390 = sand.u32 %s157, 1
          %s391 = smul.addr %s390, 8
          %s392 = scalar_lea.vmem [#allocation10], %s391
          %393 = dma.done %s389, 128
        $region68: #{tpu_custom_call.1} parent=55 // pred_fallthru
          _
      $region56: #{tpu_custom_call.1} parent=5 // pred_fallthru
        _
    $region6: #{tpu_custom_call.1} parent=1 // loop_footer
      %s27 = sadd.s32 1, %s23
    $region7: #{tpu_custom_call.1} parent=1 // loop_footer_branch
      %22 = sbr.rel target = $region3
    $region8: #{tpu_custom_call.1} parent=1 // loop_exit
      _
    %394 = vsyncpa [#allocation3], 1
    %s395 = scalar_lea.sflag [#allocation3], 1
    %396 = vsyncpa %s395, 1
    %397 = vsyncpa [#allocation6], 1
    %s398 = scalar_lea.sflag [#allocation6], 1
    %399 = vsyncpa %s398, 1
    %400 = vsyncpa [#allocation4], 1
    %s401 = scalar_lea.sflag [#allocation4], 1
    %402 = vsyncpa %s401, 1
    %403 = vsyncpa [#allocation9], 1
    %s404 = scalar_lea.sflag [#allocation9], 1
    %405 = vsyncpa %s404, 1

</llo_original>
